<compile_context>
chip_gen: v7x
topology: tpu7x:2x2x1
jax: 0.10.0
libtpu: 0.0.40
codegen_flags: <defaults>
</compile_context>

<pallas_src>
import functools

import jax
import jax.numpy as jnp
from jax import lax
from jax.experimental import pallas as pl
from jax.experimental.pallas import tpu as pltpu


def _round_up(v, m):
    return (v + m - 1) // m * m


# ---------------------------------------------------------------------------
# Kernel A (negligible cost): hsT[f, i] = dis[i] * (W^T @ X^T)[f, i], bf16,
# written per row-tile into (n_tiles, Fp, tile) so kernel B can keep it VMEM
# resident and slice along the leading axis.  Standard MK,KN dot.
# ---------------------------------------------------------------------------
def _transform_kernel(wt_ref, xt_ref, dis_ref, hst_ref):
    h = jnp.dot(wt_ref[...], xt_ref[...], preferred_element_type=jnp.float32)
    hst_ref[0] = (dis_ref[...] * h).astype(hst_ref.dtype)     # (Fp, tile)


# ---------------------------------------------------------------------------
# Kernel B: outT = dis_row * (hsT @ A_hat) + b_col, leaky-relu epilogue.
# Grid = (target-row tiles ["parallel"], source contraction tiles ["arbitrary"]).
# LHS hsT (Fp, tk), RHS adj (tk, tm) stationary -> MXU output lanes = tm
# (>= 256 for large graphs) = full MXU width on v6e/v7x.
# ---------------------------------------------------------------------------
def _aggregate_kernel(adj_ref, hst_ref, dis_ref, b_ref, o_ref, acc_ref, *,
                      negative_slope, use_relu):
    k = pl.program_id(1)

    @pl.when(k == 0)
    def _():
        acc_ref[...] = jnp.zeros_like(acc_ref)

    a = adj_ref[...].astype(jnp.bfloat16)          # (tk, tm) binary -> exact in bf16
    hst_k = hst_ref[k]                             # (Fp, tk) bf16, VMEM resident
    acc_ref[...] += jnp.dot(hst_k, a, preferred_element_type=jnp.float32)

    @pl.when(k == pl.num_programs(1) - 1)
    def _():
        out = dis_ref[...] * acc_ref[...] + b_ref[...]
        if use_relu:
            out = jnp.maximum(out, negative_slope * out)   # leaky_relu, 1 VALU op
        o_ref[...] = out.astype(o_ref.dtype)


def local_layer(x, adj, weight, bias, use_relu=True, *, negative_slope=0.01):
    """x: (B, C, F_in), adj: (N, N) with N = B*C, weight: (F_in, F_out), bias: (F_out,)."""
    B, C, F_in = x.shape
    N = B * C
    F_out = weight.shape[1]
    assert adj.shape == (N, N)

    LANE = 128
    Fp = _round_up(F_out, LANE)                 # lane-/MXU-friendly feature axis

    # Tile selection: small floor for tiny graphs; for large N use 256..1024
    # (multiple of 256) chosen so n_row_tiles >= 2 (v7x megacore).
    if N <= 256:
        tile = _round_up(N, LANE)
    else:
        tile = min(1024, max(256, _round_up(-(-N // 2), 256)))
    Np = _round_up(N, tile)
    n_tiles = Np // tile

    # ---- wrapper preprocessing (one int8 adj materialization, no N^2 eye) ----
    # TODO(synk): adj is static for a PGCN layer -- cache a_hat_p / dis_row
    # across forward calls instead of recomputing them every call.
    diag = jnp.arange(N)
    a_hat = (adj != 0).astype(jnp.int8).at[diag, diag].set(1)
    deg = jnp.sum(a_hat.astype(jnp.int32), axis=0).astype(jnp.float32)   # in-degree >= 1
    dis = lax.rsqrt(deg)

    if Np == N:
        a_hat_p = a_hat
        dis_row = dis[None, :]
    else:
        a_hat_p = jnp.zeros((Np, Np), jnp.int8).at[:N, :N].set(a_hat)
        dis_row = jnp.ones((1, Np), jnp.float32).at[:, :N].set(dis[None, :])

    x2d = x.reshape(N, F_in).astype(jnp.float32)
    if Np == N:
        xt_p = x2d.T
    else:
        xt_p = jnp.zeros((F_in, Np), jnp.float32).at[:, :N].set(x2d.T)
    wt_p = jnp.zeros((Fp, F_in), jnp.float32).at[:F_out, :].set(
        weight.astype(jnp.float32).T)
    b_col = jnp.zeros((Fp, 1), jnp.float32).at[:F_out, 0].set(
        bias.astype(jnp.float32))

    # ---- kernel A: per-node linear transform + source-side scaling ----
    hst = pl.pallas_call(
        _transform_kernel,
        out_shape=jax.ShapeDtypeStruct((n_tiles, Fp, tile), jnp.bfloat16),
        grid_spec=pltpu.PrefetchScalarGridSpec(
            num_scalar_prefetch=0,
            grid=(n_tiles,),
            in_specs=[
                pl.BlockSpec((Fp, F_in), lambda i: (0, 0)),     # W^T (stationary)
                pl.BlockSpec((F_in, tile), lambda i: (0, i)),   # X^T tile
                pl.BlockSpec((1, tile), lambda i: (0, i)),      # dis (source)
            ],
            out_specs=pl.BlockSpec((1, Fp, tile), lambda i: (i, 0, 0)),
        ),
        compiler_params=pltpu.CompilerParams(
            dimension_semantics=("parallel",)),
    )(wt_p, xt_p, dis_row)

    # ---- kernel B: normalized aggregation over the graph ----
    kernel_b = functools.partial(_aggregate_kernel,
                                 negative_slope=negative_slope,
                                 use_relu=use_relu)
    outT = pl.pallas_call(
        kernel_b,
        out_shape=jax.ShapeDtypeStruct((Fp, Np), jnp.float32),
        grid_spec=pltpu.PrefetchScalarGridSpec(
            num_scalar_prefetch=0,
            grid=(n_tiles, n_tiles),                 # (target tiles, source tiles)
            in_specs=[
                # adj[src block k, tgt block i]: contraction on dim 0 (natural RHS)
                pl.BlockSpec((tile, tile), lambda i, k: (k, i)),
                # hsT: full array, constant index -> fetched once, VMEM resident
                pl.BlockSpec((n_tiles, Fp, tile), lambda i, k: (0, 0, 0)),
                pl.BlockSpec((1, tile), lambda i, k: (0, i)),    # dis (target)
                pl.BlockSpec((Fp, 1), lambda i, k: (0, 0)),      # bias column
            ],
            out_specs=pl.BlockSpec((Fp, tile), lambda i, k: (0, i)),
            scratch_shapes=[pltpu.VMEM((Fp, tile), jnp.float32)],
        ),
        compiler_params=pltpu.CompilerParams(
            dimension_semantics=("parallel", "arbitrary")),
    )(a_hat_p, hst, dis_row, b_col)

    # One small (Fp, N) transpose back to node-major; negligible vs the N^2 adj stream.
    return outT[:F_out, :N].T.reshape(B, C, F_out)


def _reference(x, adj, weight, bias, use_relu=True):
    """Pure-JAX f32 reference mirroring torch_geometric GCNConv + leaky_relu."""
    B, C, F_in = x.shape
    N = B * C
    x2d = x.reshape(N, F_in)
    a_hat = jnp.maximum((adj != 0).astype(jnp.float32), jnp.eye(N, dtype=jnp.float32))
    deg = jnp.sum(a_hat, axis=0)
    dis = 1.0 / jnp.sqrt(deg)
    h = x2d @ weight
    out = dis[:, None] * (a_hat.T @ (dis[:, None] * h)) + bias[None, :]
    if use_relu:
        out = jnp.where(out > 0, out, 0.01 * out)
    return out.reshape(B, C, -1)


if __name__ == "__main__":
    key = jax.random.PRNGKey(0)
    k_x, k_adj, k_w, k_b = jax.random.split(key, 4)

    B, C, F_in, F_out = 2, 4, 16, 32
    N = B * C

    x = jax.random.normal(k_x, (B, C, F_in), dtype=jnp.float32)

    # Deterministic sparse-ish symmetric adjacency over N = B*C nodes.
    adj_raw = (jax.random.uniform(k_adj, (N, N)) > 0.6).astype(jnp.float32)
    adj = jnp.maximum(adj_raw, adj_raw.T)

    # Deterministic GCNConv parameters (glorot-ish scale).
    weight = jax.random.normal(k_w, (F_in, F_out), dtype=jnp.float32) / jnp.sqrt(F_in)
    bias = jax.random.normal(k_b, (F_out,), dtype=jnp.float32) * 0.1

    out = local_layer(x, adj, weight, bias, use_relu=True)
    out = jax.block_until_ready(out)

    ref = _reference(x, adj, weight, bias, use_relu=True)
    assert out.shape == (B, C, F_out)
    # Aggregation runs on the bf16 MXU path (f32 accumulate); tolerance reflects
    # bf16 rounding of the transformed features.
    assert jnp.allclose(out, ref, atol=5e-2, rtol=5e-2), "mismatch vs reference"

    print("KERNEL_OK")
</pallas_src>

<mosaic_0001>
module attributes {stable_mosaic.version = 11 : i64} {
  func.func @_transform_kernel(%arg0: i32, %arg1: memref<128x16xf32, #tpu.memory_space<vmem>>, %arg2: memref<16x128xf32, #tpu.memory_space<vmem>>, %arg3: memref<1x128xf32, #tpu.memory_space<vmem>>, %arg4: memref<1x128x128xbf16, #tpu.memory_space<vmem>>) attributes {dimension_semantics = [#tpu.dimension_semantics<parallel>], iteration_bounds = array<i64: 1>, scalar_prefetch = 0 : i64, scratch_operands = 0 : i64, tpu.core_type = #tpu.core_type<tc>, window_params = [{pipeline_mode = #tpu.pipeline_mode<synchronous>, transform_indices = @transform_0, window_bounds = array<i64: 128, 16>}, {transform_indices = @transform_1, window_bounds = array<i64: 16, 128>}, {transform_indices = @transform_2, window_bounds = array<i64: 1, 128>}, {transform_indices = @transform_3, window_bounds = array<i64: 1, 128, 128>}]} {
    %c0 = arith.constant 0 : index
    %c0_0 = arith.constant 0 : index
    %0 = vector.load %arg1[%c0, %c0_0] : memref<128x16xf32, #tpu.memory_space<vmem>>, vector<128x16xf32>
    %c0_1 = arith.constant 0 : index
    %c0_2 = arith.constant 0 : index
    %1 = vector.load %arg2[%c0_1, %c0_2] : memref<16x128xf32, #tpu.memory_space<vmem>>, vector<16x128xf32>
    %cst = arith.constant dense<0.000000e+00> : vector<128x128xf32>
    %2 = tpu.matmul %0, %1, %cst {dimension_numbers = #tpu.dot_dimension_numbers<[1], [0], [0], [1], [0, 0, 1, 1], [], []>} : vector<128x16xf32>, vector<16x128xf32>, vector<128x128xf32> -> vector<128x128xf32>
    %c0_3 = arith.constant 0 : index
    %c0_4 = arith.constant 0 : index
    %3 = vector.load %arg3[%c0_3, %c0_4] : memref<1x128xf32, #tpu.memory_space<vmem>>, vector<1x128xf32>
    %4 = vector.broadcast %3 : vector<1x128xf32> to vector<128x128xf32>
    %5 = arith.mulf %4, %2 : vector<128x128xf32>
    %6 = arith.truncf %5 : vector<128x128xf32> to vector<128x128xbf16>
    %c0_5 = arith.constant 0 : index
    %c0_6 = arith.constant 0 : index
    %c0_7 = arith.constant 0 : index
    %7 = vector.load %arg4[%c0_5, %c0_6, %c0_7] : memref<1x128x128xbf16, #tpu.memory_space<vmem>>, vector<1x128x128xbf16>
    %8 = vector.shape_cast %7 : vector<1x128x128xbf16> to vector<128x128xbf16>
    %9 = vector.shape_cast %6 : vector<128x128xbf16> to vector<1x128x128xbf16>
    tpu.vector_store %arg4[%c0_5, %c0_6, %c0_7], %9 {strides = array<i32>} : memref<1x128x128xbf16, #tpu.memory_space<vmem>>, vector<1x128x128xbf16>,
    return
  }
  func.func @transform_0(%arg0: i32) -> (i32, i32) {
    %c0_i32 = arith.constant 0 : i32
    %c0_i32_0 = arith.constant 0 : i32
    %c0_i32_1 = arith.constant 0 : i32
    return %c0_i32, %c0_i32_0 : i32, i32
  }
  func.func @transform_1(%arg0: i32) -> (i32, i32) {
    %c0_i32 = arith.constant 0 : i32
    %c0_i32_0 = arith.constant 0 : i32
    return %c0_i32, %arg0 : i32, i32
  }
  func.func @transform_2(%arg0: i32) -> (i32, i32) {
    %c0_i32 = arith.constant 0 : i32
    %c0_i32_0 = arith.constant 0 : i32
    return %c0_i32, %arg0 : i32, i32
  }
  func.func @transform_3(%arg0: i32) -> (i32, i32, i32) {
    %c0_i32 = arith.constant 0 : i32
    %c0_i32_0 = arith.constant 0 : i32
    %c0_i32_1 = arith.constant 0 : i32
    return %arg0, %c0_i32, %c0_i32_0 : i32, i32, i32
  }
}

</mosaic_0001>

<llo_original>
// kernel: tpu_custom_call.1
$region0: #{tpu_custom_call.1}
  #allocation0 [shape = 'u32[]', space=smem, size = 0x4, offset = 0x4, fixed_abs, tag = 'smem constant byte address 0x4 - core index']
  #allocation1 [shape = 'u32[144,128]{1,0:T(1,128)}', space=vmem, size = 0x12000, scoped, tag = 'internal scratch']
  %s0 = inlined_call_operand.vmem [shape: f32[128,16], index: 0, kind: input, shape index: {}]
  %s1 = inlined_call_operand.vmem [shape: f32[16,128], index: 1, kind: input, shape index: {}]
  %s2 = inlined_call_operand.vmem [shape: f32[1,128], index: 2, kind: input, shape index: {}]
  %s3 = inlined_call_operand.hbm [shape: bf16[1,128,128], index: 3, kind: output, shape index: {}]
  %s4 = sld [smem:[#allocation0]]
  $region22: #{tpu_custom_call.1} parent=0
    _
  %s6 = ssub.s32 1, %s4
  %s7 = scalar_select 0, %s6, %s4
  $region1: #{tpu_custom_call.1} parent=0
    #allocation2 [shape = 'u8[32768]{0}', space=vmem, size = 0x8000, scoped, tag = 'output window, operand 0, single buffered']
    #allocation3 [shape = 's32[1]{0}', space=sflag, size = 0x4, scoped, tag = 'scoped memory for tpu_custom_call.1']
    %8 = vsyncpa [#allocation3], 0
    // Predicated region
    $region2: #{tpu_custom_call.1} parent=1 // pred_check
      _
    $region3: #{tpu_custom_call.1} parent=1 // pred_check_branch
      %10 = sbr.rel (0) target = $region5
    $region4: #{tpu_custom_call.1} parent=1 // pred_region
      _
    $region5: #{tpu_custom_call.1} parent=1 // pred_fallthru
      _
    // Predicated region
    $region6: #{tpu_custom_call.1} parent=1 // pred_check
      _
    $region7: #{tpu_custom_call.1} parent=1 // pred_check_branch
      %12 = sbr.rel (0) target = $region9
    $region8: #{tpu_custom_call.1} parent=1 // pred_region
      _
    $region9: #{tpu_custom_call.1} parent=1 // pred_fallthru
      _
    // Predicated region
    $region10: #{tpu_custom_call.1} parent=1 // pred_check
      _
    $region11: #{tpu_custom_call.1} parent=1 // pred_check_branch
      %14 = sbr.rel (0) target = $region13
    $region12: #{tpu_custom_call.1} parent=1 // pred_region
      _
    $region13: #{tpu_custom_call.1} parent=1 // pred_fallthru
      _
    %v15 = vld [vmem:[%s0] sm:$0xff]
    %v16 = vld [vmem:[%s0 + $0x8] sm:$0xff]
    %v17 = vld [vmem:[%s0 + $0x10] sm:$0xff]
    %v18 = vld [vmem:[%s0 + $0x18] sm:$0xff]
    %v19 = vld [vmem:[%s0 + $0x20] sm:$0xff]
    %v20 = vld [vmem:[%s0 + $0x28] sm:$0xff]
    %v21 = vld [vmem:[%s0 + $0x30] sm:$0xff]
    %v22 = vld [vmem:[%s0 + $0x38] sm:$0xff]
    %v23 = vld [vmem:[%s0 + $0x40] sm:$0xff]
    %v24 = vld [vmem:[%s0 + $0x48] sm:$0xff]
    %v25 = vld [vmem:[%s0 + $0x50] sm:$0xff]
    %v26 = vld [vmem:[%s0 + $0x58] sm:$0xff]
    %v27 = vld [vmem:[%s0 + $0x60] sm:$0xff]
    %v28 = vld [vmem:[%s0 + $0x68] sm:$0xff]
    %v29 = vld [vmem:[%s0 + $0x70] sm:$0xff]
    %v30 = vld [vmem:[%s0 + $0x78] sm:$0xff]
    %v31 = vld [vmem:[%s1] sm:$0xff]
    %v32 = vld [vmem:[%s1 + $0x8] sm:$0xff]
    %vm33 = vcmask 130048
    %v35 = vsel %vm33, %v15, 0
    %v38 = vsel %vm33, %v16, 0
    %v41 = vsel %vm33, %v17, 0
    %v44 = vsel %vm33, %v18, 0
    %v47 = vsel %vm33, %v19, 0
    %v50 = vsel %vm33, %v20, 0
    %v53 = vsel %vm33, %v21, 0
    %v56 = vsel %vm33, %v22, 0
    %v59 = vsel %vm33, %v23, 0
    %v62 = vsel %vm33, %v24, 0
    %v65 = vsel %vm33, %v25, 0
    %v68 = vsel %vm33, %v26, 0
    %v71 = vsel %vm33, %v27, 0
    %v74 = vsel %vm33, %v28, 0
    %v77 = vsel %vm33, %v29, 0
    %v80 = vsel %vm33, %v30, 0
    %82 = vmatprep.subr.mxu0 0.0
    %83 = vmatpush1.msra.mxu0 %v31
    %84 = vmatprep.subr.mxu0 0.0
    %85 = vmatpush1.msra.mxu0 %v32
    %86 = vmatprep.subr.mxu0 0.0
    %87 = vmatpush1.msra.mxu0 0.0
    %88 = vmatprep.subr.mxu0 0.0
    %89 = vmatpush1.msra.mxu0 0.0
    %90 = vmatprep.subr.mxu0 0.0
    %91 = vmatpush1.msra.mxu0 0.0
    %92 = vmatprep.subr.mxu0 0.0
    %93 = vmatpush1.msra.mxu0 0.0
    %94 = vmatprep.subr.mxu0 0.0
    %95 = vmatpush1.msra.mxu0 0.0
    %96 = vmatprep.subr.mxu0 0.0
    %97 = vmatpush1.msra.mxu0 0.0
    %98 = vmatprep.subr.mxu0 0.0
    %99 = vmatpush1.msra.mxu0 0.0
    %100 = vmatprep.subr.mxu0 0.0
    %101 = vmatpush1.msra.mxu0 0.0
    %102 = vmatprep.subr.mxu0 0.0
    %103 = vmatpush1.msra.mxu0 0.0
    %104 = vmatprep.subr.mxu0 0.0
    %105 = vmatpush1.msra.mxu0 0.0
    %106 = vmatprep.subr.mxu0 0.0
    %107 = vmatpush1.msra.mxu0 0.0
    %108 = vmatprep.subr.mxu0 0.0
    %109 = vmatpush1.msra.mxu0 0.0
    %110 = vmatprep.subr.mxu0 0.0
    %111 = vmatpush1.msra.mxu0 0.0
    %112 = vmatprep.subr.mxu0 0.0
    %113 = vmatpush1.msra.mxu0 0.0
    %114 = vmatprep.subr.mxu0 0.0
    %115 = vmatpush1.msra.mxu0 0.0
    %116 = vmatprep.subr.mxu0 0.0
    %117 = vmatpush1.msra.mxu0 0.0
    %118 = vmatprep.subr.mxu0 0.0
    %119 = vmatpush1.msra.mxu0 0.0
    %120 = vmatprep.subr.mxu0 0.0
    %121 = vmatpush1.msra.mxu0 0.0
    %122 = vmatprep.subr.mxu0 0.0
    %123 = vmatpush1.msra.mxu0 0.0
    %124 = vmatprep.subr.mxu0 0.0
    %125 = vmatpush1.msra.mxu0 0.0
    %126 = vmatprep.subr.mxu0 0.0
    %127 = vmatpush1.msra.mxu0 0.0
    %128 = vmatprep.subr.mxu0 0.0
    %129 = vmatpush1.msra.mxu0 0.0
    %130 = vmatprep.subr.mxu0 0.0
    %131 = vmatpush1.msra.mxu0 0.0
    %132 = vmatprep.subr.mxu0 0.0
    %133 = vmatpush1.msra.mxu0 0.0
    %134 = vmatprep.subr.mxu0 0.0
    %135 = vmatpush1.msra.mxu0 0.0
    %136 = vmatprep.subr.mxu0 0.0
    %137 = vmatpush1.msra.mxu0 0.0
    %138 = vmatprep.subr.mxu0 0.0
    %139 = vmatpush1.msra.mxu0 0.0
    %140 = vmatprep.subr.mxu0 0.0
    %141 = vmatpush1.msra.mxu0 0.0
    %142 = vmatprep.subr.mxu0 0.0
    %143 = vmatpush1.msra.mxu0 0.0
    %144 = vmatprep.subr.mxu0 0.0
    %145 = vmatpush1.msra.mxu0 0.0
    %146 = vmatprep.mubr.f32.mxu0 0.0
    %147 = vmatmul.mubr.f32.gmra.mrb[0].mxu0 %v35
    %v148 = vpop.f32.mrb[0].mxu0
    %v149 = vadd.f32 0.0, %v148
    %v150 = vpop.f32.mrb[0].mxu0
    %151 = vmatprep.mubr.f32.mxu0 0.0
    %152 = vmatmul.mubr.f32.gmra.mrb[0].mxu0 %v38
    %v153 = vpop.f32.mrb[0].mxu0
    %v154 = vadd.f32 0.0, %v153
    %v155 = vpop.f32.mrb[0].mxu0
    %156 = vmatprep.mubr.f32.mxu0 0.0
    %157 = vmatmul.mubr.f32.gmra.mrb[0].mxu0 %v41
    %v158 = vpop.f32.mrb[0].mxu0
    %v159 = vadd.f32 0.0, %v158
    %v160 = vpop.f32.mrb[0].mxu0
    %161 = vmatprep.mubr.f32.mxu0 0.0
    %162 = vmatmul.mubr.f32.gmra.mrb[0].mxu0 %v44
    %v163 = vpop.f32.mrb[0].mxu0
    %v164 = vadd.f32 0.0, %v163
    %v165 = vpop.f32.mrb[0].mxu0
    %166 = vmatprep.mubr.f32.mxu0 0.0
    %167 = vmatmul.mubr.f32.gmra.mrb[0].mxu0 %v47
    %v168 = vpop.f32.mrb[0].mxu0
    %v169 = vadd.f32 0.0, %v168
    %v170 = vpop.f32.mrb[0].mxu0
    %171 = vmatprep.mubr.f32.mxu0 0.0
    %172 = vmatmul.mubr.f32.gmra.mrb[0].mxu0 %v50
    %v173 = vpop.f32.mrb[0].mxu0
    %v174 = vadd.f32 0.0, %v173
    %v175 = vpop.f32.mrb[0].mxu0
    %176 = vmatprep.mubr.f32.mxu0 0.0
    %177 = vmatmul.mubr.f32.gmra.mrb[0].mxu0 %v53
    %v178 = vpop.f32.mrb[0].mxu0
    %v179 = vadd.f32 0.0, %v178
    %v180 = vpop.f32.mrb[0].mxu0
    %181 = vmatprep.mubr.f32.mxu0 0.0
    %182 = vmatmul.mubr.f32.gmra.mrb[0].mxu0 %v56
    %v183 = vpop.f32.mrb[0].mxu0
    %v184 = vadd.f32 0.0, %v183
    %v185 = vpop.f32.mrb[0].mxu0
    %186 = vmatprep.mubr.f32.mxu0 0.0
    %187 = vmatmul.mubr.f32.gmra.mrb[0].mxu0 %v59
    %v188 = vpop.f32.mrb[0].mxu0
    %v189 = vadd.f32 0.0, %v188
    %v190 = vpop.f32.mrb[0].mxu0
    %191 = vmatprep.mubr.f32.mxu0 0.0
    %192 = vmatmul.mubr.f32.gmra.mrb[0].mxu0 %v62
    %v193 = vpop.f32.mrb[0].mxu0
    %v194 = vadd.f32 0.0, %v193
    %v195 = vpop.f32.mrb[0].mxu0
    %196 = vmatprep.mubr.f32.mxu0 0.0
    %197 = vmatmul.mubr.f32.gmra.mrb[0].mxu0 %v65
    %v198 = vpop.f32.mrb[0].mxu0
    %v199 = vadd.f32 0.0, %v198
    %v200 = vpop.f32.mrb[0].mxu0
    %201 = vmatprep.mubr.f32.mxu0 0.0
    %202 = vmatmul.mubr.f32.gmra.mrb[0].mxu0 %v68
    %v203 = vpop.f32.mrb[0].mxu0
    %v204 = vadd.f32 0.0, %v203
    %v205 = vpop.f32.mrb[0].mxu0
    %206 = vmatprep.mubr.f32.mxu0 0.0
    %207 = vmatmul.mubr.f32.gmra.mrb[0].mxu0 %v71
    %v208 = vpop.f32.mrb[0].mxu0
    %v209 = vadd.f32 0.0, %v208
    %v210 = vpop.f32.mrb[0].mxu0
    %211 = vmatprep.mubr.f32.mxu0 0.0
    %212 = vmatmul.mubr.f32.gmra.mrb[0].mxu0 %v74
    %v213 = vpop.f32.mrb[0].mxu0
    %v214 = vadd.f32 0.0, %v213
    %v215 = vpop.f32.mrb[0].mxu0
    %216 = vmatprep.mubr.f32.mxu0 0.0
    %217 = vmatmul.mubr.f32.gmra.mrb[0].mxu0 %v77
    %v218 = vpop.f32.mrb[0].mxu0
    %v219 = vadd.f32 0.0, %v218
    %v220 = vpop.f32.mrb[0].mxu0
    %221 = vmatprep.mubr.f32.mxu0 0.0
    %222 = vmatmul.mubr.f32.gmra.mrb[0].mxu0 %v80
    %v223 = vpop.f32.mrb[0].mxu0
    %v224 = vadd.f32 0.0, %v223
    %v225 = vpop.f32.mrb[0].mxu0
    %226 = vdwg.mxu0
    %v227 = vld [vmem:[%s2] sm:$0x1]
    %v229 = vlaneseq
    %v230 = vshrl.u32 %v229, 7
    %v231 = vsub.s32 0, %v230
    %v232 = vrot.slane %v227, %v231
    %v234 = vmul.f32 %v232, %v149
    %v235 = vmul.f32 %v232, %v154
    %v236 = vmul.f32 %v232, %v159
    %v237 = vmul.f32 %v232, %v164
    %v238 = vmul.f32 %v232, %v169
    %v239 = vmul.f32 %v232, %v174
    %v240 = vmul.f32 %v232, %v179
    %v241 = vmul.f32 %v232, %v184
    %v242 = vmul.f32 %v232, %v189
    %v243 = vmul.f32 %v232, %v194
    %v244 = vmul.f32 %v232, %v199
    %v245 = vmul.f32 %v232, %v204
    %v246 = vmul.f32 %v232, %v209
    %v247 = vmul.f32 %v232, %v214
    %v248 = vmul.f32 %v232, %v219
    %v249 = vmul.f32 %v232, %v224
    %v250 = vpack.c.bf16 %v235, %v234
    %v251 = vpack.c.bf16 %v237, %v236
    %v252 = vpack.c.bf16 %v239, %v238
    %v253 = vpack.c.bf16 %v241, %v240
    %v254 = vpack.c.bf16 %v243, %v242
    %v255 = vpack.c.bf16 %v245, %v244
    %v256 = vpack.c.bf16 %v247, %v246
    %v257 = vpack.c.bf16 %v249, %v248
    %v266 = vunpack.c.l.b16 %v250
    %v267 = vunpack.c.h.b16 %v250
    %v268 = vunpack.c.l.b16 %v251
    %v269 = vunpack.c.h.b16 %v251
    %v270 = vunpack.c.l.b16 %v252
    %v271 = vunpack.c.h.b16 %v252
    %v272 = vunpack.c.l.b16 %v253
    %v273 = vunpack.c.h.b16 %v253
    %v274 = vunpack.c.l.b16 %v254
    %v275 = vunpack.c.h.b16 %v254
    %v276 = vunpack.c.l.b16 %v255
    %v277 = vunpack.c.h.b16 %v255
    %v278 = vunpack.c.l.b16 %v256
    %v279 = vunpack.c.h.b16 %v256
    %v280 = vunpack.c.l.b16 %v257
    %v281 = vunpack.c.h.b16 %v257
    %v282 = vpack.c.b16 %v266, %v266
    %v283 = vpack.c.b16 %v267, %v267
    %v284 = vpack.c.b16 %v268, %v268
    %v285 = vpack.c.b16 %v269, %v269
    %v286 = vpack.c.b16 %v270, %v270
    %v287 = vpack.c.b16 %v271, %v271
    %v288 = vpack.c.b16 %v272, %v272
    %v289 = vpack.c.b16 %v273, %v273
    %v290 = vpack.c.b16 %v274, %v274
    %v291 = vpack.c.b16 %v275, %v275
    %v292 = vpack.c.b16 %v276, %v276
    %v293 = vpack.c.b16 %v277, %v277
    %v294 = vpack.c.b16 %v278, %v278
    %v295 = vpack.c.b16 %v279, %v279
    %v296 = vpack.c.b16 %v280, %v280
    %v297 = vpack.c.b16 %v281, %v281
    %314 = vst [vmem:[#allocation2] sm:$0xf] %v282
    %315 = vst [vmem:[#allocation2 + $0x4] sm:$0xf] %v283
    %316 = vst [vmem:[#allocation2 + $0x8] sm:$0xf] %v284
    %317 = vst [vmem:[#allocation2 + $0xc] sm:$0xf] %v285
    %318 = vst [vmem:[#allocation2 + $0x10] sm:$0xf] %v286
    %319 = vst [vmem:[#allocation2 + $0x14] sm:$0xf] %v287
    %320 = vst [vmem:[#allocation2 + $0x18] sm:$0xf] %v288
    %321 = vst [vmem:[#allocation2 + $0x1c] sm:$0xf] %v289
    %322 = vst [vmem:[#allocation2 + $0x20] sm:$0xf] %v290
    %323 = vst [vmem:[#allocation2 + $0x24] sm:$0xf] %v291
    %324 = vst [vmem:[#allocation2 + $0x28] sm:$0xf] %v292
    %325 = vst [vmem:[#allocation2 + $0x2c] sm:$0xf] %v293
    %326 = vst [vmem:[#allocation2 + $0x30] sm:$0xf] %v294
    %327 = vst [vmem:[#allocation2 + $0x34] sm:$0xf] %v295
    %328 = vst [vmem:[#allocation2 + $0x38] sm:$0xf] %v296
    %329 = vst [vmem:[#allocation2 + $0x3c] sm:$0xf] %v297
    // Predicated region
    $region14: #{tpu_custom_call.1} parent=1 // pred_check
      _
    $region15: #{tpu_custom_call.1} parent=1 // pred_check_branch
      %331 = sbr.rel (0) target = $region17
    $region16: #{tpu_custom_call.1} parent=1 // pred_region
      %s333 = ssub.s32 1024, 1024
      %334 = vsyncadd [#allocation3], %s333
      %s335 = sshll.u32 [#allocation2], 4
      %s336 = int_to_ptr.vmem [resolvable:$true] %s335
      %341 = dma.vmem_to_hbm [thread:$0]  %s336, 1024, %s3, [#allocation3], 64, 64, 4
    $region17: #{tpu_custom_call.1} parent=1 // pred_fallthru
      _
    // Predicated region
    $region18: #{tpu_custom_call.1} parent=1 // pred_check
      _
    $region19: #{tpu_custom_call.1} parent=1 // pred_check_branch
      %343 = sbr.rel (0) target = $region21
    $region20: #{tpu_custom_call.1} parent=1 // pred_region
      %344 = dma.done [#allocation3], 1024
    $region21: #{tpu_custom_call.1} parent=1 // pred_fallthru
      _
    %345 = vsyncpa [#allocation3], 1

</llo_original>
